<compile_context>
chip_gen: v5e
topology: v5e:2x2
jax: 0.10.0
libtpu: 0.0.40
codegen_flags: <defaults>
</compile_context>

<pallas_src>
import jax
import jax.numpy as jnp
from jax.experimental import pallas as pl
from jax.experimental.pallas import tpu as pltpu

IN_FEATURES = 300
OUT_FEATURES = 300


def _round_up(n, m):
    return ((n + m - 1) // m) * m


def _logreg_kernel(x_ref, wt_ref, b_ref, o_ref):
    # x_ref  : [TB, IN]   (VMEM, streamed + double-buffered per grid step)
    # wt_ref : [IN, OUT]  (VMEM, resident; already transposed in the wrapper)
    # b_ref  : [1, OUT]   (VMEM, resident)
    # o_ref  : [TB, OUT]  (VMEM, streamed per grid step)
    y = jnp.dot(x_ref[...], wt_ref[...], preferred_element_type=jnp.float32)
    y = y + b_ref[...]                       # bias broadcast over the batch tile
    # Exact sigmoid: exp on the EUP, one VPU divide — fully hidden under the
    # HBM-bound streaming, and bit-accurate enough for tight tolerances.
    o_ref[...] = (1.0 / (1.0 + jnp.exp(-y))).astype(o_ref.dtype)


def logistic_regression(x, w, b, *, block_b=4096, tb=None):
    """x: [B, 300] f32, w: [300, 300] f32 (torch [out, in] layout), b: [300] f32."""
    B = x.shape[0]
    wt = w.T                       # one-time XLA transpose outside the kernel
    b2 = b.reshape(1, OUT_FEATURES)

    if tb is None:
        if B <= 128:
            # Single (possibly ragged) block; keep sublane (8-row) alignment.
            tb = max(8, _round_up(B, 8))
        else:
            # Split so the grid has >=2 steps (keeps v7x's 2nd TC busy), tiles
            # aligned to 128 rows for the MXU, capped at block_b for VMEM.
            tb = min(block_b, _round_up(pl.cdiv(B, 2), 128))

    grid = (pl.cdiv(B, tb),)

    out = pl.pallas_call(
        _logreg_kernel,
        out_shape=jax.ShapeDtypeStruct((B, OUT_FEATURES), x.dtype),
        grid=grid,
        in_specs=[
            pl.BlockSpec((tb, IN_FEATURES), lambda i: (i, 0)),              # streamed x tile
            pl.BlockSpec((IN_FEATURES, OUT_FEATURES), lambda i: (0, 0)),    # resident weight^T
            pl.BlockSpec((1, OUT_FEATURES), lambda i: (0, 0)),              # resident bias
        ],
        out_specs=pl.BlockSpec((tb, OUT_FEATURES), lambda i: (i, 0)),
        compiler_params=pltpu.CompilerParams(
            dimension_semantics=("parallel",),
        ),
    )(x, wt, b2)

    return out


if __name__ == "__main__":
    key = jax.random.PRNGKey(0)
    kx, kw, kb = jax.random.split(key, 3)

    # Deterministic torch-like init: U(-1/sqrt(in), 1/sqrt(in))
    bound = 1.0 / jnp.sqrt(jnp.float32(IN_FEATURES))
    w = jax.random.uniform(kw, (OUT_FEATURES, IN_FEATURES), jnp.float32, -bound, bound)
    b = jax.random.uniform(kb, (OUT_FEATURES,), jnp.float32, -bound, bound)

    # Small, single-block path.
    B = 8
    x = jax.random.normal(kx, (B, IN_FEATURES), dtype=jnp.float32)
    out = logistic_regression(x, w, b)
    jax.block_until_ready(out)
    ref = jax.nn.sigmoid(x @ w.T + b)
    assert out.shape == ref.shape, "shape mismatch (single block)"
    assert jnp.allclose(out, ref, atol=1e-5, rtol=1e-5), "mismatch vs reference (single block)"

    # Tiled + ragged-last-block path (grid > 1, B not a multiple of tb).
    B2 = 20
    x2 = jax.random.normal(kx, (B2, IN_FEATURES), dtype=jnp.float32)
    out2 = logistic_regression(x2, w, b, tb=8)   # grid = 3, last block has 4 valid rows
    jax.block_until_ready(out2)
    ref2 = jax.nn.sigmoid(x2 @ w.T + b)
    assert out2.shape == ref2.shape, "shape mismatch (tiled)"
    assert jnp.allclose(out2, ref2, atol=1e-5, rtol=1e-5), "mismatch vs reference (tiled)"

    print("KERNEL_OK")
</pallas_src>

<mosaic_0001>
module attributes {stable_mosaic.version = 11 : i64} {
  func.func @_logreg_kernel(%arg0: i32, %arg1: memref<8x300xf32, #tpu.memory_space<vmem>>, %arg2: memref<300x300xf32, #tpu.memory_space<vmem>>, %arg3: memref<1x300xf32, #tpu.memory_space<vmem>>, %arg4: memref<8x300xf32, #tpu.memory_space<vmem>>) attributes {dimension_semantics = [#tpu.dimension_semantics<parallel>], iteration_bounds = array<i64: 1>, scalar_prefetch = 0 : i64, scratch_operands = 0 : i64, tpu.core_type = #tpu.core_type<tc>, window_params = [{transform_indices = @transform_0, window_bounds = array<i64: 8, 300>}, {pipeline_mode = #tpu.pipeline_mode<synchronous>, transform_indices = @transform_1, window_bounds = array<i64: 300, 300>}, {pipeline_mode = #tpu.pipeline_mode<synchronous>, transform_indices = @transform_2, window_bounds = array<i64: 1, 300>}, {transform_indices = @transform_3, window_bounds = array<i64: 8, 300>}]} {
    %c0 = arith.constant 0 : index
    %c0_0 = arith.constant 0 : index
    %0 = vector.load %arg1[%c0, %c0_0] : memref<8x300xf32, #tpu.memory_space<vmem>>, vector<8x300xf32>
    %c0_1 = arith.constant 0 : index
    %c0_2 = arith.constant 0 : index
    %1 = vector.load %arg2[%c0_1, %c0_2] : memref<300x300xf32, #tpu.memory_space<vmem>>, vector<300x300xf32>
    %cst = arith.constant dense<0.000000e+00> : vector<8x300xf32>
    %2 = tpu.matmul %0, %1, %cst {dimension_numbers = #tpu.dot_dimension_numbers<[1], [0], [0], [1], [0, 0, 1, 1], [], []>} : vector<8x300xf32>, vector<300x300xf32>, vector<8x300xf32> -> vector<8x300xf32>
    %c0_3 = arith.constant 0 : index
    %c0_4 = arith.constant 0 : index
    %3 = vector.load %arg3[%c0_3, %c0_4] : memref<1x300xf32, #tpu.memory_space<vmem>>, vector<1x300xf32>
    %4 = vector.broadcast %3 : vector<1x300xf32> to vector<8x300xf32>
    %5 = arith.addf %2, %4 : vector<8x300xf32>
    %cst_5 = arith.constant 0.000000e+00 : f32
    %6 = vector.broadcast %cst_5 : f32 to vector<8x300xf32>
    %7 = arith.subf %6, %5 : vector<8x300xf32>
    %8 = math.exp %7 : vector<8x300xf32>
    %cst_6 = arith.constant 1.000000e+00 : f32
    %9 = vector.broadcast %cst_6 : f32 to vector<8x300xf32>
    %10 = arith.addf %9, %8 : vector<8x300xf32>
    %cst_7 = arith.constant 1.000000e+00 : f32
    %11 = vector.broadcast %cst_7 : f32 to vector<8x300xf32>
    %12 = arith.divf %11, %10 : vector<8x300xf32>
    %c0_8 = arith.constant 0 : index
    %c0_9 = arith.constant 0 : index
    %13 = vector.load %arg4[%c0_8, %c0_9] : memref<8x300xf32, #tpu.memory_space<vmem>>, vector<8x300xf32>
    tpu.vector_store %arg4[%c0_8, %c0_9], %12 {strides = array<i32>} : memref<8x300xf32, #tpu.memory_space<vmem>>, vector<8x300xf32>,
    return
  }
  func.func @transform_0(%arg0: i32) -> (i32, i32) {
    %c0_i32 = arith.constant 0 : i32
    %c0_i32_0 = arith.constant 0 : i32
    return %arg0, %c0_i32 : i32, i32
  }
  func.func @transform_1(%arg0: i32) -> (i32, i32) {
    %c0_i32 = arith.constant 0 : i32
    %c0_i32_0 = arith.constant 0 : i32
    %c0_i32_1 = arith.constant 0 : i32
    return %c0_i32, %c0_i32_0 : i32, i32
  }
  func.func @transform_2(%arg0: i32) -> (i32, i32) {
    %c0_i32 = arith.constant 0 : i32
    %c0_i32_0 = arith.constant 0 : i32
    %c0_i32_1 = arith.constant 0 : i32
    return %c0_i32, %c0_i32_0 : i32, i32
  }
  func.func @transform_3(%arg0: i32) -> (i32, i32) {
    %c0_i32 = arith.constant 0 : i32
    %c0_i32_0 = arith.constant 0 : i32
    return %arg0, %c0_i32 : i32, i32
  }
}

</mosaic_0001>

<llo_original>
// kernel: tpu_custom_call.1
$region0: #{tpu_custom_call.1}
  #allocation0 [shape = 'u32[]', space=smem, size = 0x4, offset = 0x4, fixed_abs, tag = 'smem constant byte address 0x4 - core index']
  #allocation1 [shape = 'u32[72,128]{1,0:T(1,128)}', space=vmem, size = 0x9000, scoped, tag = 'internal scratch']
  %s0 = inlined_call_operand.hbm [shape: f32[8,300], index: 0, kind: input, shape index: {}]
  %s1 = inlined_call_operand.hbm [shape: f32[300,300], index: 1, kind: input, shape index: {}]
  %s2 = inlined_call_operand.hbm [shape: f32[1,300], index: 2, kind: input, shape index: {}]
  %s3 = inlined_call_operand.hbm [shape: f32[8,300], index: 3, kind: output, shape index: {}]
  %s4 = sld [smem:[#allocation0]]
  $region34: #{tpu_custom_call.1} parent=0
    _
  %s6 = ssub.s32 1, %s4
  %s7 = scalar_select 0, %s6, %s4
  $region1: #{tpu_custom_call.1} parent=0
    #allocation2 [shape = 'u8[12288]{0}', space=vmem, size = 0x3000, scoped, tag = 'input window, operand 0, single buffered']
    #allocation3 [shape = 's32[1]{0}', space=sflag, size = 0x4, scoped, tag = 'scoped memory for tpu_custom_call.1']
    #allocation4 [shape = 's32[1]{0}', space=sflag, size = 0x4, scoped, tag = 'scoped memory for tpu_custom_call.1']
    #allocation5 [shape = 'u8[466944]{0}', space=vmem, size = 0x72000, scoped, tag = 'input window, operand 1, single buffered']
    #allocation6 [shape = 's32[1]{0}', space=sflag, size = 0x4, scoped, tag = 'scoped memory for tpu_custom_call.1']
    #allocation7 [shape = 'u8[1536]{0}', space=vmem, size = 0x800, scoped, tag = 'input window, operand 2, single buffered']
    #allocation8 [shape = 'u8[12288]{0}', space=vmem, size = 0x3000, scoped, tag = 'output window, operand 0, single buffered']
    %8 = vsyncpa [#allocation3], 0
    %9 = vsyncpa [#allocation6], 0
    %10 = vsyncpa [#allocation4], 0
    // Predicated region
    $region2: #{tpu_custom_call.1} parent=1 // pred_check
      _
    $region3: #{tpu_custom_call.1} parent=1 // pred_check_branch
      %12 = sbr.rel (0) target = $region5
    $region4: #{tpu_custom_call.1} parent=1 // pred_region
      %14 = vsyncadd [#allocation3], 0
      %s16 = sshll.u32 %s0, 4
      %s17 = int_to_ptr.hbm [resolvable:$true] %s16
      %s18 = sshll.u32 [#allocation2], 4
      %s19 = int_to_ptr.vmem [resolvable:$true] %s18
      %21 = dma.hbm_to_vmem [thread:$0]  %s17, 384, %s19, [#allocation3]
    $region5: #{tpu_custom_call.1} parent=1 // pred_fallthru
      _
    // Predicated region
    $region6: #{tpu_custom_call.1} parent=1 // pred_check
      _
    $region7: #{tpu_custom_call.1} parent=1 // pred_check_branch
      %23 = sbr.rel (0) target = $region9
    $region8: #{tpu_custom_call.1} parent=1 // pred_region
      %25 = vsyncadd [#allocation6], 0
      %s26 = sshll.u32 %s1, 4
      %s27 = int_to_ptr.hbm [resolvable:$true] %s26
      %s28 = sshll.u32 [#allocation5], 4
      %s29 = int_to_ptr.vmem [resolvable:$true] %s28
      %34 = dma.hbm_to_vmem [thread:$0]  %s27, 14592, %s29, [#allocation6], 384, 384, 24
    $region9: #{tpu_custom_call.1} parent=1 // pred_fallthru
      _
    // Predicated region
    $region10: #{tpu_custom_call.1} parent=1 // pred_check
      _
    $region11: #{tpu_custom_call.1} parent=1 // pred_check_branch
      %36 = sbr.rel (0) target = $region13
    $region12: #{tpu_custom_call.1} parent=1 // pred_region
      %38 = vsyncadd [#allocation6], 0
      %s40 = sshll.u32 %s2, 4
      %s41 = int_to_ptr.hbm [resolvable:$true] %s40
      %s42 = sshll.u32 [#allocation7], 4
      %s43 = int_to_ptr.vmem [resolvable:$true] %s42
      %45 = dma.hbm_to_vmem [thread:$0]  %s41, 48, %s43, [#allocation6]
    $region13: #{tpu_custom_call.1} parent=1 // pred_fallthru
      _
    // Predicated region
    $region14: #{tpu_custom_call.1} parent=1 // pred_check
      _
    $region15: #{tpu_custom_call.1} parent=1 // pred_check_branch
      %47 = sbr.rel (0) target = $region17
    $region16: #{tpu_custom_call.1} parent=1 // pred_region
      %49 = dma.done [#allocation3], 384
    $region17: #{tpu_custom_call.1} parent=1 // pred_fallthru
      _
    // Predicated region
    $region18: #{tpu_custom_call.1} parent=1 // pred_check
      _
    $region19: #{tpu_custom_call.1} parent=1 // pred_check_branch
      %51 = sbr.rel (0) target = $region21
    $region20: #{tpu_custom_call.1} parent=1 // pred_region
      %53 = dma.done [#allocation6], 14592
    $region21: #{tpu_custom_call.1} parent=1 // pred_fallthru
      _
    // Predicated region
    $region22: #{tpu_custom_call.1} parent=1 // pred_check
      _
    $region23: #{tpu_custom_call.1} parent=1 // pred_check_branch
      %55 = sbr.rel (0) target = $region25
    $region24: #{tpu_custom_call.1} parent=1 // pred_region
      %57 = dma.done [#allocation6], 48
    $region25: #{tpu_custom_call.1} parent=1 // pred_fallthru
      _
    %v58 = vld [vmem:[#allocation2] sm:$0xff]
    %v59 = vld [vmem:[#allocation2 + $0x8] sm:$0xff]
    %v60 = vld [vmem:[#allocation2 + $0x10] sm:$0xff]
    %v61 = vld [vmem:[#allocation5] sm:$0xff]
    %v62 = vld [vmem:[#allocation5 + $0x8] sm:$0xff]
    %v63 = vld [vmem:[#allocation5 + $0x10] sm:$0xff]
    %v64 = vld [vmem:[#allocation5 + $0x18] sm:$0xff]
    %v65 = vld [vmem:[#allocation5 + $0x20] sm:$0xff]
    %v66 = vld [vmem:[#allocation5 + $0x28] sm:$0xff]
    %v67 = vld [vmem:[#allocation5 + $0x30] sm:$0xff]
    %v68 = vld [vmem:[#allocation5 + $0x38] sm:$0xff]
    %v69 = vld [vmem:[#allocation5 + $0x40] sm:$0xff]
    %v70 = vld [vmem:[#allocation5 + $0x48] sm:$0xff]
    %v71 = vld [vmem:[#allocation5 + $0x50] sm:$0xff]
    %v72 = vld [vmem:[#allocation5 + $0x58] sm:$0xff]
    %v73 = vld [vmem:[#allocation5 + $0x60] sm:$0xff]
    %v74 = vld [vmem:[#allocation5 + $0x68] sm:$0xff]
    %v75 = vld [vmem:[#allocation5 + $0x70] sm:$0xff]
    %v76 = vld [vmem:[#allocation5 + $0x78] sm:$0xff]
    %v77 = vld [vmem:[#allocation5 + $0x80] sm:$0xff]
    %v78 = vld [vmem:[#allocation5 + $0x88] sm:$0xff]
    %v79 = vld [vmem:[#allocation5 + $0x90] sm:$0xff]
    %v80 = vld [vmem:[#allocation5 + $0x98] sm:$0xff]
    %v81 = vld [vmem:[#allocation5 + $0xa0] sm:$0xff]
    %v82 = vld [vmem:[#allocation5 + $0xa8] sm:$0xff]
    %v83 = vld [vmem:[#allocation5 + $0xb0] sm:$0xff]
    %v84 = vld [vmem:[#allocation5 + $0xb8] sm:$0xff]
    %v85 = vld [vmem:[#allocation5 + $0xc0] sm:$0xff]
    %v86 = vld [vmem:[#allocation5 + $0xc8] sm:$0xff]
    %v87 = vld [vmem:[#allocation5 + $0xd0] sm:$0xff]
    %v88 = vld [vmem:[#allocation5 + $0xd8] sm:$0xff]
    %v89 = vld [vmem:[#allocation5 + $0xe0] sm:$0xff]
    %v90 = vld [vmem:[#allocation5 + $0xe8] sm:$0xff]
    %v91 = vld [vmem:[#allocation5 + $0xf0] sm:$0xff]
    %v92 = vld [vmem:[#allocation5 + $0xf8] sm:$0xff]
    %v93 = vld [vmem:[#allocation5 + $0x100] sm:$0xff]
    %v94 = vld [vmem:[#allocation5 + $0x108] sm:$0xff]
    %v95 = vld [vmem:[#allocation5 + $0x110] sm:$0xff]
    %v96 = vld [vmem:[#allocation5 + $0x118] sm:$0xff]
    %v97 = vld [vmem:[#allocation5 + $0x120] sm:$0xff]
    %v98 = vld [vmem:[#allocation5 + $0x128] sm:$0xff]
    %v99 = vld [vmem:[#allocation5 + $0x130] sm:$0xff]
    %v100 = vld [vmem:[#allocation5 + $0x138] sm:$0xff]
    %v101 = vld [vmem:[#allocation5 + $0x140] sm:$0xff]
    %v102 = vld [vmem:[#allocation5 + $0x148] sm:$0xff]
    %v103 = vld [vmem:[#allocation5 + $0x150] sm:$0xff]
    %v104 = vld [vmem:[#allocation5 + $0x158] sm:$0xff]
    %v105 = vld [vmem:[#allocation5 + $0x160] sm:$0xff]
    %v106 = vld [vmem:[#allocation5 + $0x168] sm:$0xff]
    %v107 = vld [vmem:[#allocation5 + $0x170] sm:$0xff]
    %v108 = vld [vmem:[#allocation5 + $0x178] sm:$0xff]
    %v109 = vld [vmem:[#allocation5 + $0x180] sm:$0xff]
    %v110 = vld [vmem:[#allocation5 + $0x188] sm:$0xff]
    %v111 = vld [vmem:[#allocation5 + $0x190] sm:$0xff]
    %v112 = vld [vmem:[#allocation5 + $0x198] sm:$0xff]
    %v113 = vld [vmem:[#allocation5 + $0x1a0] sm:$0xff]
    %v114 = vld [vmem:[#allocation5 + $0x1a8] sm:$0xff]
    %v115 = vld [vmem:[#allocation5 + $0x1b0] sm:$0xff]
    %v116 = vld [vmem:[#allocation5 + $0x1b8] sm:$0xff]
    %v117 = vld [vmem:[#allocation5 + $0x1c0] sm:$0xff]
    %v118 = vld [vmem:[#allocation5 + $0x1c8] sm:$0xff]
    %v119 = vld [vmem:[#allocation5 + $0x1d0] sm:$0xff]
    %v120 = vld [vmem:[#allocation5 + $0x1d8] sm:$0xff]
    %v121 = vld [vmem:[#allocation5 + $0x1e0] sm:$0xff]
    %v122 = vld [vmem:[#allocation5 + $0x1e8] sm:$0xff]
    %v123 = vld [vmem:[#allocation5 + $0x1f0] sm:$0xff]
    %v124 = vld [vmem:[#allocation5 + $0x1f8] sm:$0xff]
    %v125 = vld [vmem:[#allocation5 + $0x200] sm:$0xff]
    %v126 = vld [vmem:[#allocation5 + $0x208] sm:$0xff]
    %v127 = vld [vmem:[#allocation5 + $0x210] sm:$0xff]
    %v128 = vld [vmem:[#allocation5 + $0x218] sm:$0xff]
    %v129 = vld [vmem:[#allocation5 + $0x220] sm:$0xff]
    %v130 = vld [vmem:[#allocation5 + $0x228] sm:$0xff]
    %v131 = vld [vmem:[#allocation5 + $0x230] sm:$0xff]
    %v132 = vld [vmem:[#allocation5 + $0x238] sm:$0xff]
    %v133 = vld [vmem:[#allocation5 + $0x240] sm:$0xff]
    %v134 = vld [vmem:[#allocation5 + $0x248] sm:$0xff]
    %v135 = vld [vmem:[#allocation5 + $0x250] sm:$0xff]
    %v136 = vld [vmem:[#allocation5 + $0x258] sm:$0xff]
    %v137 = vld [vmem:[#allocation5 + $0x260] sm:$0xff]
    %v138 = vld [vmem:[#allocation5 + $0x268] sm:$0xff]
    %v139 = vld [vmem:[#allocation5 + $0x270] sm:$0xff]
    %v140 = vld [vmem:[#allocation5 + $0x278] sm:$0xff]
    %v141 = vld [vmem:[#allocation5 + $0x280] sm:$0xff]
    %v142 = vld [vmem:[#allocation5 + $0x288] sm:$0xff]
    %v143 = vld [vmem:[#allocation5 + $0x290] sm:$0xff]
    %v144 = vld [vmem:[#allocation5 + $0x298] sm:$0xff]
    %v145 = vld [vmem:[#allocation5 + $0x2a0] sm:$0xff]
    %v146 = vld [vmem:[#allocation5 + $0x2a8] sm:$0xff]
    %v147 = vld [vmem:[#allocation5 + $0x2b0] sm:$0xff]
    %v148 = vld [vmem:[#allocation5 + $0x2b8] sm:$0xff]
    %v149 = vld [vmem:[#allocation5 + $0x2c0] sm:$0xff]
    %v150 = vld [vmem:[#allocation5 + $0x2c8] sm:$0xff]
    %v151 = vld [vmem:[#allocation5 + $0x2d0] sm:$0xff]
    %v152 = vld [vmem:[#allocation5 + $0x2d8] sm:$0xff]
    %v153 = vld [vmem:[#allocation5 + $0x2e0] sm:$0xff]
    %v154 = vld [vmem:[#allocation5 + $0x2e8] sm:$0xff]
    %v155 = vld [vmem:[#allocation5 + $0x2f0] sm:$0xff]
    %v156 = vld [vmem:[#allocation5 + $0x2f8] sm:$0xff]
    %v157 = vld [vmem:[#allocation5 + $0x300] sm:$0xff]
    %v158 = vld [vmem:[#allocation5 + $0x308] sm:$0xff]
    %v159 = vld [vmem:[#allocation5 + $0x310] sm:$0xff]
    %v160 = vld [vmem:[#allocation5 + $0x318] sm:$0xff]
    %v161 = vld [vmem:[#allocation5 + $0x320] sm:$0xff]
    %v162 = vld [vmem:[#allocation5 + $0x328] sm:$0xff]
    %v163 = vld [vmem:[#allocation5 + $0x330] sm:$0xff]
    %v164 = vld [vmem:[#allocation5 + $0x338] sm:$0xff]
    %v165 = vld [vmem:[#allocation5 + $0x340] sm:$0xff]
    %v166 = vld [vmem:[#allocation5 + $0x348] sm:$0xff]
    %v167 = vld [vmem:[#allocation5 + $0x350] sm:$0xff]
    %v168 = vld [vmem:[#allocation5 + $0x358] sm:$0xff]
    %v169 = vld [vmem:[#allocation5 + $0x360] sm:$0xff]
    %v170 = vld [vmem:[#allocation5 + $0x368] sm:$0xff]
    %v171 = vld [vmem:[#allocation5 + $0x370] sm:$0xff]
    %v172 = vld [vmem:[#allocation5 + $0x378] sm:$0xf]
    %v173 = vld [vmem:[#allocation5 + $0x380] sm:$0xf]
    %v174 = vld [vmem:[#allocation5 + $0x388] sm:$0xf]
    %v175 = vld [vmem:[#allocation7] sm:$0x7]
    %v177 = vperm.slane %v175, 0
    %v178 = vperm.slane %v175, 1
    %v179 = vperm.slane %v175, 2
    %vm183 = vcmask 359424
    %v185 = vsel %vm183, %v60, 0
    %vm187 = vcmask 1043456
    %v189 = vsel %vm187, %v172, 0
    %v192 = vsel %vm187, %v173, 0
    %v195 = vsel %vm187, %v174, 0
    %197 = vmatpush.msra.mxu0 %v106
    %198 = vmatpush.msra.mxu0 %v103
    %199 = vmatpush.msra.mxu0 %v100
    %200 = vmatpush.msra.mxu0 %v97
    %201 = vmatpush.msra.mxu0 %v94
    %202 = vmatpush.msra.mxu0 %v91
    %203 = vmatpush.msra.mxu0 %v88
    %204 = vmatpush.msra.mxu0 %v85
    %205 = vmatpush.msra.mxu0 %v82
    %206 = vmatpush.msra.mxu0 %v79
    %207 = vmatpush.msra.mxu0 %v76
    %208 = vmatpush.msra.mxu0 %v73
    %209 = vmatpush.msra.mxu0 %v70
    %210 = vmatpush.msra.mxu0 %v67
    %211 = vmatpush.msra.mxu0 %v64
    %212 = vmatpush.msra.mxu0 %v61
    %213 = vmatmul.f32.gmra.mxu0 %v58
    %v214 = vpop.f32.mrf.mxu0
    %v215 = vadd.f32 %v177, %v214
    %216 = vdwg.mxu0
    %217 = vmatpush.msra.mxu0 %v154
    %218 = vmatpush.msra.mxu0 %v151
    %219 = vmatpush.msra.mxu0 %v148
    %220 = vmatpush.msra.mxu0 %v145
    %221 = vmatpush.msra.mxu0 %v142
    %222 = vmatpush.msra.mxu0 %v139
    %223 = vmatpush.msra.mxu0 %v136
    %224 = vmatpush.msra.mxu0 %v133
    %225 = vmatpush.msra.mxu0 %v130
    %226 = vmatpush.msra.mxu0 %v127
    %227 = vmatpush.msra.mxu0 %v124
    %228 = vmatpush.msra.mxu0 %v121
    %229 = vmatpush.msra.mxu0 %v118
    %230 = vmatpush.msra.mxu0 %v115
    %231 = vmatpush.msra.mxu0 %v112
    %232 = vmatpush.msra.mxu0 %v109
    %233 = vmatmul.f32.gmra.mxu0 %v59
    %v234 = vpop.f32.mrf.mxu0
    %v235 = vadd.f32 %v215, %v234
    %236 = vdwg.mxu0
    %237 = vmatpush.msra.mxu0 0.0
    %238 = vmatpush.msra.mxu0 0.0
    %239 = vmatpush.msra.mxu0 0.0
    %240 = vmatpush.msra.mxu0 0.0
    %241 = vmatpush.msra.mxu0 0.0
    %242 = vmatpush.msra.mxu0 0.0
    %243 = vmatpush.msra.mxu0 0.0
    %244 = vmatpush.msra.mxu0 0.0
    %245 = vmatpush.msra.mxu0 0.0
    %246 = vmatpush.msra.mxu0 0.0
    %247 = vmatpush.msra.mxu0 %v189
    %248 = vmatpush.msra.mxu0 %v169
    %249 = vmatpush.msra.mxu0 %v166
    %250 = vmatpush.msra.mxu0 %v163
    %251 = vmatpush.msra.mxu0 %v160
    %252 = vmatpush.msra.mxu0 %v157
    %253 = vmatmul.f32.gmra.mxu0 %v185
    %v254 = vpop.f32.mrf.mxu0
    %v255 = vadd.f32 %v235, %v254
    %256 = vdwg.mxu0
    %257 = vmatpush.msra.mxu0 %v107
    %258 = vmatpush.msra.mxu0 %v104
    %259 = vmatpush.msra.mxu0 %v101
    %260 = vmatpush.msra.mxu0 %v98
    %261 = vmatpush.msra.mxu0 %v95
    %262 = vmatpush.msra.mxu0 %v92
    %263 = vmatpush.msra.mxu0 %v89
    %264 = vmatpush.msra.mxu0 %v86
    %265 = vmatpush.msra.mxu0 %v83
    %266 = vmatpush.msra.mxu0 %v80
    %267 = vmatpush.msra.mxu0 %v77
    %268 = vmatpush.msra.mxu0 %v74
    %269 = vmatpush.msra.mxu0 %v71
    %270 = vmatpush.msra.mxu0 %v68
    %271 = vmatpush.msra.mxu0 %v65
    %272 = vmatpush.msra.mxu0 %v62
    %273 = vmatmul.f32.gmra.mxu0 %v58
    %v274 = vpop.f32.mrf.mxu0
    %v275 = vadd.f32 %v178, %v274
    %276 = vdwg.mxu0
    %277 = vmatpush.msra.mxu0 %v155
    %278 = vmatpush.msra.mxu0 %v152
    %279 = vmatpush.msra.mxu0 %v149
    %280 = vmatpush.msra.mxu0 %v146
    %281 = vmatpush.msra.mxu0 %v143
    %282 = vmatpush.msra.mxu0 %v140
    %283 = vmatpush.msra.mxu0 %v137
    %284 = vmatpush.msra.mxu0 %v134
    %285 = vmatpush.msra.mxu0 %v131
    %286 = vmatpush.msra.mxu0 %v128
    %287 = vmatpush.msra.mxu0 %v125
    %288 = vmatpush.msra.mxu0 %v122
    %289 = vmatpush.msra.mxu0 %v119
    %290 = vmatpush.msra.mxu0 %v116
    %291 = vmatpush.msra.mxu0 %v113
    %292 = vmatpush.msra.mxu0 %v110
    %293 = vmatmul.f32.gmra.mxu0 %v59
    %v294 = vpop.f32.mrf.mxu0
    %v295 = vadd.f32 %v275, %v294
    %296 = vdwg.mxu0
    %297 = vmatpush.msra.mxu0 0.0
    %298 = vmatpush.msra.mxu0 0.0
    %299 = vmatpush.msra.mxu0 0.0
    %300 = vmatpush.msra.mxu0 0.0
    %301 = vmatpush.msra.mxu0 0.0
    %302 = vmatpush.msra.mxu0 0.0
    %303 = vmatpush.msra.mxu0 0.0
    %304 = vmatpush.msra.mxu0 0.0
    %305 = vmatpush.msra.mxu0 0.0
    %306 = vmatpush.msra.mxu0 0.0
    %307 = vmatpush.msra.mxu0 %v192
    %308 = vmatpush.msra.mxu0 %v170
    %309 = vmatpush.msra.mxu0 %v167
    %310 = vmatpush.msra.mxu0 %v164
    %311 = vmatpush.msra.mxu0 %v161
    %312 = vmatpush.msra.mxu0 %v158
    %313 = vmatmul.f32.gmra.mxu0 %v185
    %v314 = vpop.f32.mrf.mxu0
    %v315 = vadd.f32 %v295, %v314
    %316 = vdwg.mxu0
    %317 = vmatpush.msra.mxu0 %v108
    %318 = vmatpush.msra.mxu0 %v105
    %319 = vmatpush.msra.mxu0 %v102
    %320 = vmatpush.msra.mxu0 %v99
    %321 = vmatpush.msra.mxu0 %v96
    %322 = vmatpush.msra.mxu0 %v93
    %323 = vmatpush.msra.mxu0 %v90
    %324 = vmatpush.msra.mxu0 %v87
    %325 = vmatpush.msra.mxu0 %v84
    %326 = vmatpush.msra.mxu0 %v81
    %327 = vmatpush.msra.mxu0 %v78
    %328 = vmatpush.msra.mxu0 %v75
    %329 = vmatpush.msra.mxu0 %v72
    %330 = vmatpush.msra.mxu0 %v69
    %331 = vmatpush.msra.mxu0 %v66
    %332 = vmatpush.msra.mxu0 %v63
    %333 = vmatmul.f32.gmra.mxu0 %v58
    %v334 = vpop.f32.mrf.mxu0
    %v335 = vadd.f32 %v179, %v334
    %336 = vdwg.mxu0
    %337 = vmatpush.msra.mxu0 %v156
    %338 = vmatpush.msra.mxu0 %v153
    %339 = vmatpush.msra.mxu0 %v150
    %340 = vmatpush.msra.mxu0 %v147
    %341 = vmatpush.msra.mxu0 %v144
    %342 = vmatpush.msra.mxu0 %v141
    %343 = vmatpush.msra.mxu0 %v138
    %344 = vmatpush.msra.mxu0 %v135
    %345 = vmatpush.msra.mxu0 %v132
    %346 = vmatpush.msra.mxu0 %v129
    %347 = vmatpush.msra.mxu0 %v126
    %348 = vmatpush.msra.mxu0 %v123
    %349 = vmatpush.msra.mxu0 %v120
    %350 = vmatpush.msra.mxu0 %v117
    %351 = vmatpush.msra.mxu0 %v114
    %352 = vmatpush.msra.mxu0 %v111
    %353 = vmatmul.f32.gmra.mxu0 %v59
    %v354 = vpop.f32.mrf.mxu0
    %v355 = vadd.f32 %v335, %v354
    %356 = vdwg.mxu0
    %357 = vmatpush.msra.mxu0 0.0
    %358 = vmatpush.msra.mxu0 0.0
    %359 = vmatpush.msra.mxu0 0.0
    %360 = vmatpush.msra.mxu0 0.0
    %361 = vmatpush.msra.mxu0 0.0
    %362 = vmatpush.msra.mxu0 0.0
    %363 = vmatpush.msra.mxu0 0.0
    %364 = vmatpush.msra.mxu0 0.0
    %365 = vmatpush.msra.mxu0 0.0
    %366 = vmatpush.msra.mxu0 0.0
    %367 = vmatpush.msra.mxu0 %v195
    %368 = vmatpush.msra.mxu0 %v171
    %369 = vmatpush.msra.mxu0 %v168
    %370 = vmatpush.msra.mxu0 %v165
    %371 = vmatpush.msra.mxu0 %v162
    %372 = vmatpush.msra.mxu0 %v159
    %373 = vmatmul.f32.gmra.mxu0 %v185
    %v374 = vpop.f32.mrf.mxu0
    %v375 = vadd.f32 %v355, %v374
    %376 = vdwg.mxu0
    %v377 = vsub.f32 0.0, %v255
    %v378 = vsub.f32 0.0, %v315
    %v379 = vsub.f32 0.0, %v375
    %v380 = vmul.f32 %v377, 1.442695
    %v381 = vpow.pop %v380
    %v382 = vmul.f32 %v378, 1.442695
    %v383 = vpow.pop %v382
    %v384 = vmul.f32 %v379, 1.442695
    %v385 = vpow.pop %v384
    %v386 = vadd.f32 %v381, 1.0
    %v387 = vadd.f32 %v383, 1.0
    %v388 = vadd.f32 %v385, 1.0
    %v389 = vrcp.pop %v386
    %v390 = vmul.f32 %v386, %v389
    %v391 = vsub.f32 1.0, %v390
    %v392 = vmul.f32 %v389, %v391
    %v393 = vadd.f32 %v389, %v392
    %vm394 = vweird.f32 %v386
    %vm395 = vweird.f32 %v389
    %vm396 = vmor %vm394, %vm395
    %v397 = vsel %vm396, %v389, %v393
    %v398 = vand.u32 2147483647, %v386
    %vm399 = vcmp.eq.f32.partialorder %v398, 8.507059e+37
    %v400 = vand.u32 %v386, 2147483648
    %v401 = vor.u32 1.1754944e-38, %v400
    %v402 = vsel %vm399, %v401, %v397
    %v403 = vmul.f32 1.0, %v402
    %v404 = vrcp.pop %v387
    %v405 = vmul.f32 %v387, %v404
    %v406 = vsub.f32 1.0, %v405
    %v407 = vmul.f32 %v404, %v406
    %v408 = vadd.f32 %v404, %v407
    %vm409 = vweird.f32 %v387
    %vm410 = vweird.f32 %v404
    %vm411 = vmor %vm409, %vm410
    %v412 = vsel %vm411, %v404, %v408
    %v413 = vand.u32 2147483647, %v387
    %vm414 = vcmp.eq.f32.partialorder %v413, 8.507059e+37
    %v415 = vand.u32 %v387, 2147483648
    %v416 = vor.u32 1.1754944e-38, %v415
    %v417 = vsel %vm414, %v416, %v412
    %v418 = vmul.f32 1.0, %v417
    %v419 = vrcp.pop %v388
    %v420 = vmul.f32 %v388, %v419
    %v421 = vsub.f32 1.0, %v420
    %v422 = vmul.f32 %v419, %v421
    %v423 = vadd.f32 %v419, %v422
    %vm424 = vweird.f32 %v388
    %vm425 = vweird.f32 %v419
    %vm426 = vmor %vm424, %vm425
    %v427 = vsel %vm426, %v419, %v423
    %v428 = vand.u32 2147483647, %v388
    %vm429 = vcmp.eq.f32.partialorder %v428, 8.507059e+37
    %v430 = vand.u32 %v388, 2147483648
    %v431 = vor.u32 1.1754944e-38, %v430
    %v432 = vsel %vm429, %v431, %v427
    %v433 = vmul.f32 1.0, %v432
    %434 = vst [vmem:[#allocation8] sm:$0xff] %v403
    %435 = vst [vmem:[#allocation8 + $0x8] sm:$0xff] %v418
    %436 = vst.msk [vmem:[#allocation8 + $0x10] sm:$0xff] %vm183, %v433
    // Predicated region
    $region26: #{tpu_custom_call.1} parent=1 // pred_check
      _
    $region27: #{tpu_custom_call.1} parent=1 // pred_check_branch
      %438 = sbr.rel (0) target = $region29
    $region28: #{tpu_custom_call.1} parent=1 // pred_region
      %440 = vsyncadd [#allocation4], 0
      %s442 = sshll.u32 [#allocation8], 4
      %s443 = int_to_ptr.vmem [resolvable:$true] %s442
      %s444 = sshll.u32 %s3, 4
      %s445 = int_to_ptr.hbm [resolvable:$true] %s444
      %447 = dma.vmem_to_hbm [thread:$0]  %s443, 384, %s445, [#allocation4]
    $region29: #{tpu_custom_call.1} parent=1 // pred_fallthru
      _
    // Predicated region
    $region30: #{tpu_custom_call.1} parent=1 // pred_check
      _
    $region31: #{tpu_custom_call.1} parent=1 // pred_check_branch
      %449 = sbr.rel (0) target = $region33
    $region32: #{tpu_custom_call.1} parent=1 // pred_region
      %451 = dma.done [#allocation4], 384
    $region33: #{tpu_custom_call.1} parent=1 // pred_fallthru
      _
    %452 = vsyncpa [#allocation3], 1
    %453 = vsyncpa [#allocation6], 1
    %454 = vsyncpa [#allocation4], 1

</llo_original>
